<compile_context>
chip_gen: v6e
topology: v6e:2x2x1
jax: 0.10.0
libtpu: 0.0.40
codegen_flags: <defaults>
</compile_context>

<pallas_src>
import functools

import jax
import jax.numpy as jnp
from jax.experimental import pallas as pl
from jax.experimental.pallas import tpu as pltpu


VMEM_BUDGET = 48 * 1024 * 1024          # scoped-VMEM cap that is safe on v5e/v6e/v7x
_WS_BUDGET = (VMEM_BUDGET * 3) // 4     # target per-kernel working set (headroom)


# ------------------------------ tiling helpers ------------------------------ #

def _tile(dim, target, align):
    """Largest divisor of `dim` <= target, preferring multiples of `align`."""
    if dim <= target:
        return dim
    t = (target // align) * align
    while t >= align:
        if dim % t == 0:
            return t
        t -= align
    # No aligned divisor: fall back to the largest (possibly unaligned) divisor
    # <= target instead of silently returning the full dim (VMEM safety).
    for t in range(min(target, dim), 0, -1):
        if dim % t == 0:
            return t
    return dim


def _mosaic_params(dims, ws_bytes=0):
    """Dimension semantics + raised VMEM limit when the working set needs it."""
    if ws_bytes > 12 * 1024 * 1024:      # would not fit the default scoped VMEM
        return pltpu.CompilerParams(dimension_semantics=dims,
                                    vmem_limit_bytes=VMEM_BUDGET)
    return pltpu.CompilerParams(dimension_semantics=dims)


# --------------------- fused RMSNorm + matmul (+ bias) ---------------------- #

def _ln_matmul_kernel(x_ref, g_ref, w_ref, o_ref, *, eps):
    x = x_ref[...]                                          # [tm, H] f32
    var = jnp.mean(x * x, axis=-1, keepdims=True)
    xn = (g_ref[...] * (x * jax.lax.rsqrt(var + eps))).astype(jnp.bfloat16)
    o_ref[...] = jnp.dot(xn, w_ref[...],
                         preferred_element_type=jnp.float32).astype(o_ref.dtype)


def _ln_matmul_bias_kernel(x_ref, g_ref, w_ref, b_ref, o_ref, *, eps):
    x = x_ref[...]
    var = jnp.mean(x * x, axis=-1, keepdims=True)
    xn = (g_ref[...] * (x * jax.lax.rsqrt(var + eps))).astype(jnp.bfloat16)
    acc = jnp.dot(xn, w_ref[...], preferred_element_type=jnp.float32)
    o_ref[...] = (acc + b_ref[...]).astype(o_ref.dtype)


def ln_matmul(x2d, gamma, w, b=None, *, eps, out_dtype,
              tm_target=512, tn_target=512):
    """out = rmsnorm(x2d) @ w (+ b).  x2d f32 [M,H], w bf16 [H,N]."""
    M, H = x2d.shape
    N = w.shape[1]
    ob = jnp.dtype(out_dtype).itemsize

    def ws(tm, tn):                       # double-buffered working-set estimate
        return 2 * tm * H * 4 + 2 * H * tn * 2 + 2 * tm * tn * ob + 2 * tn * 4

    tm = _tile(M, tm_target, 8)
    tn = _tile(N, tn_target, 128)
    while ws(tm, tn) > _WS_BUDGET and tn > 128:
        nt = _tile(N, max(tn // 2, 128), 128)
        if nt >= tn:
            break
        tn = nt
    while ws(tm, tn) > _WS_BUDGET and tm > 8:
        nt = _tile(M, max(tm // 2, 8), 8)
        if nt >= tm:
            break
        tm = nt

    grid = (M // tm, N // tn)
    in_specs = [
        pl.BlockSpec((tm, H), lambda i, j: (i, 0)),
        pl.BlockSpec((1, H), lambda i, j: (0, 0)),
        pl.BlockSpec((H, tn), lambda i, j: (0, j)),
    ]
    args = [x2d, gamma, w]
    if b is not None:
        in_specs.append(pl.BlockSpec((1, tn), lambda i, j: (0, j)))
        args.append(b)
        kernel = functools.partial(_ln_matmul_bias_kernel, eps=eps)
    else:
        kernel = functools.partial(_ln_matmul_kernel, eps=eps)

    return pl.pallas_call(
        kernel,
        out_shape=jax.ShapeDtypeStruct((M, N), out_dtype),
        grid=grid,
        in_specs=in_specs,
        out_specs=pl.BlockSpec((tm, tn), lambda i, j: (i, j)),
        compiler_params=_mosaic_params(("parallel", "parallel"), ws(tm, tn)),
    )(*args)


# -------------------- o_proj matmul with fused residual --------------------- #

def _oproj_kernel(a_ref, w_ref, r_ref, o_ref):
    # a: [tm, H] bf16, w: [H, tn] bf16, r: [tm, tn] f32 residual
    o_ref[...] = r_ref[...] + jnp.dot(a_ref[...], w_ref[...],
                                      preferred_element_type=jnp.float32)


def oproj_residual(attn2d, w, resid2d, *, tm_target=512, tn_target=256):
    M, H = attn2d.shape
    N = w.shape[1]

    def ws(tm, tn):
        return 2 * tm * H * 2 + 2 * H * tn * 2 + 2 * tm * tn * 4 + 2 * tm * tn * 4

    tm = _tile(M, tm_target, 8)
    tn = _tile(N, tn_target, 128)
    while ws(tm, tn) > _WS_BUDGET and tm > 8:
        nt = _tile(M, max(tm // 2, 8), 8)
        if nt >= tm:
            break
        tm = nt

    grid = (M // tm, N // tn)
    return pl.pallas_call(
        _oproj_kernel,
        out_shape=jax.ShapeDtypeStruct((M, N), jnp.float32),
        grid=grid,
        in_specs=[
            pl.BlockSpec((tm, H), lambda i, j: (i, 0)),
            pl.BlockSpec((H, tn), lambda i, j: (0, j)),
            pl.BlockSpec((tm, tn), lambda i, j: (i, j)),
        ],
        out_specs=pl.BlockSpec((tm, tn), lambda i, j: (i, j)),
        compiler_params=_mosaic_params(("parallel", "parallel"), ws(tm, tn)),
    )(attn2d, w, resid2d)


# ------------- fused RMSNorm + SwiGLU MLP + residual (I-tiled) --------------- #

def _ln_norm_into_scratch(x_ref, g_ref, xn_ref, eps):
    x = x_ref[...]                                          # [tm, H] f32
    var = jnp.mean(x * x, axis=-1, keepdims=True)
    xn_ref[...] = (g_ref[...] * (x * jax.lax.rsqrt(var + eps))).astype(xn_ref.dtype)


def _mlp_kernel(hs_ref, g_ref, wg_ref, wu_ref, wd_ref, o_ref, xn_ref, acc_ref, *, eps):
    j = pl.program_id(1)

    @pl.when(j == 0)
    def _():
        _ln_norm_into_scratch(hs_ref, g_ref, xn_ref, eps)
        acc_ref[...] = jnp.zeros_like(acc_ref)

    xn = xn_ref[...]                                                    # [tm, H] bf16
    g = jnp.dot(xn, wg_ref[...], preferred_element_type=jnp.float32)    # [tm, ti]
    u = jnp.dot(xn, wu_ref[...], preferred_element_type=jnp.float32)
    h = (g * jax.nn.sigmoid(g)) * u                                     # silu(g) * u
    acc_ref[...] += jnp.dot(h.astype(jnp.bfloat16), wd_ref[...],
                            preferred_element_type=jnp.float32)

    @pl.when(j == pl.num_programs(1) - 1)
    def _():
        o_ref[...] = hs_ref[...] + acc_ref[...]                         # fused residual


def mlp_block(hs2d, gamma, wg, wu, wd, *, eps, tm_target=256, ti_target=512):
    M, H = hs2d.shape
    I = wg.shape[1]

    def ws(tm, ti):
        return (2 * tm * H * 4          # hs in (f32, double buffered)
                + 2 * 2 * H * ti * 2    # wg + wu (bf16)
                + 2 * ti * H * 2        # wd (bf16)
                + 2 * tm * H * 4        # out (f32)
                + tm * H * 2            # xn scratch
                + tm * H * 4)           # acc scratch

    tm = _tile(M, tm_target, 8)
    ti = _tile(I, ti_target, 128)
    while ws(tm, ti) > _WS_BUDGET and ti > 128:
        nt = _tile(I, max(ti // 2, 128), 128)
        if nt >= ti:
            break
        ti = nt
    while ws(tm, ti) > _WS_BUDGET and tm > 8:
        nt = _tile(M, max(tm // 2, 8), 8)
        if nt >= tm:
            break
        tm = nt

    grid = (M // tm, I // ti)
    return pl.pallas_call(
        functools.partial(_mlp_kernel, eps=eps),
        out_shape=jax.ShapeDtypeStruct((M, H), jnp.float32),
        grid=grid,
        in_specs=[
            pl.BlockSpec((tm, H), lambda i, j: (i, 0)),
            pl.BlockSpec((1, H), lambda i, j: (0, 0)),
            pl.BlockSpec((H, ti), lambda i, j: (0, j)),
            pl.BlockSpec((H, ti), lambda i, j: (0, j)),
            pl.BlockSpec((ti, H), lambda i, j: (j, 0)),
        ],
        out_specs=pl.BlockSpec((tm, H), lambda i, j: (i, 0)),
        scratch_shapes=[pltpu.VMEM((tm, H), jnp.bfloat16),
                        pltpu.VMEM((tm, H), jnp.float32)],
        compiler_params=_mosaic_params(("parallel", "arbitrary"), ws(tm, ti)),
    )(hs2d, gamma, wg, wu, wd)


# --------------------- flash attention (GQA + fused RoPE) -------------------- #

def _rotate_half(x):
    half = x.shape[-1] // 2
    return jnp.concatenate([-x[..., half:], x[..., :half]], axis=-1)


def _flash_kernel(q_ref, k_ref, v_ref, cq_ref, sq_ref, ck_ref, sk_ref,
                  o_ref, m_ref, l_ref, acc_ref, *, scale):
    G, tq, D = q_ref.shape[1], q_ref.shape[2], q_ref.shape[3]
    tkv = k_ref.shape[2]
    qi = pl.program_id(2)
    ki = pl.program_id(3)

    @pl.when(ki == 0)
    def _():
        m_ref[...] = jnp.full_like(m_ref, -1e30)
        l_ref[...] = jnp.zeros_like(l_ref)
        acc_ref[...] = jnp.zeros_like(acc_ref)

    q_start = qi * tq
    kv_start = ki * tkv

    @pl.when(kv_start < q_start + tq)          # skip fully-masked (future) KV tiles
    def _():
        # ---- fused RoPE (VPU/XLU work, hidden under the MXU matmuls) ----
        qh = q_ref[0].astype(jnp.float32)                         # [G, tq, D]
        qh = qh * cq_ref[...][None] + _rotate_half(qh) * sq_ref[...][None]
        q = qh.reshape(G * tq, D).astype(jnp.bfloat16)            # one big MXU M-dim

        kh = k_ref[0, 0].astype(jnp.float32)                      # [tkv, D]
        kh = kh * ck_ref[...] + _rotate_half(kh) * sk_ref[...]
        k = kh.astype(jnp.bfloat16)
        v = v_ref[0, 0]

        s = jax.lax.dot_general(q, k, (((1,), (1,)), ((), ())),
                                preferred_element_type=jnp.float32) * scale
        row = jax.lax.broadcasted_iota(jnp.int32, (G * tq, tkv), 0) % tq
        col = jax.lax.broadcasted_iota(jnp.int32, (G * tq, tkv), 1)
        s = jnp.where(kv_start + col <= q_start + row, s, -1e30)

        m_prev = m_ref[...]
        m_new = jnp.maximum(m_prev, jnp.max(s, axis=-1, keepdims=True))
        alpha = jnp.exp(m_prev - m_new)
        p = jnp.exp(s - m_new)
        l_ref[...] = alpha * l_ref[...] + jnp.sum(p, axis=-1, keepdims=True)
        acc_ref[...] = alpha * acc_ref[...] + jnp.dot(
            p.astype(v.dtype), v, preferred_element_type=jnp.float32)
        m_ref[...] = m_new

    @pl.when(ki == pl.num_programs(3) - 1)
    def _():
        out = acc_ref[...] / l_ref[...]
        o_ref[0] = out.reshape(G, tq, D).astype(o_ref.dtype)


def flash_attention(q, k, v, cos, sin, *, scale, groups,
                    tq_target=512, tkv_target=256):
    """Causal GQA flash attention with RoPE fused in.  q:[B,NH,S,D], k/v:[B,NKV,S,D]."""
    B, NH, S, D = q.shape
    NKV = NH // groups
    tq = _tile(S, tq_target, 8)
    tkv = _tile(S, tkv_target, 128)
    grid = (B, NKV, S // tq, S // tkv)

    def q_map(b, h, qi, ki):
        return (b, h, qi, 0)

    # Clamp the kv block index for fully-masked (future) tiles so Pallas re-uses
    # the previously fetched block instead of DMA-ing data that is never used.
    def kv_map(b, h, qi, ki):
        return (b, h, jnp.minimum(ki, (qi * tq + tq - 1) // tkv), 0)

    def cq_map(b, h, qi, ki):
        return (qi, 0)

    def ck_map(b, h, qi, ki):
        return (jnp.minimum(ki, (qi * tq + tq - 1) // tkv), 0)

    return pl.pallas_call(
        functools.partial(_flash_kernel, scale=scale),
        out_shape=jax.ShapeDtypeStruct((B, NH, S, D), q.dtype),
        grid=grid,
        in_specs=[
            pl.BlockSpec((1, groups, tq, D), q_map),
            pl.BlockSpec((1, 1, tkv, D), kv_map),
            pl.BlockSpec((1, 1, tkv, D), kv_map),
            pl.BlockSpec((tq, D), cq_map),
            pl.BlockSpec((tq, D), cq_map),
            pl.BlockSpec((tkv, D), ck_map),
            pl.BlockSpec((tkv, D), ck_map),
        ],
        out_specs=pl.BlockSpec((1, groups, tq, D), q_map),
        scratch_shapes=[
            pltpu.VMEM((groups * tq, 1), jnp.float32),   # m
            pltpu.VMEM((groups * tq, 1), jnp.float32),   # l
            pltpu.VMEM((groups * tq, D), jnp.float32),   # acc
        ],
        compiler_params=pltpu.CompilerParams(
            dimension_semantics=("parallel", "parallel", "parallel", "arbitrary")),
    )(q, k, v, cos, sin, cos, sin)


# ------------------------------ model wrapper -------------------------------- #

def rope_tables(S, D, theta):
    """cos/sin tables matching the spec's RotaryEmbedding (arange(D)/D over full D)."""
    pos = jnp.arange(S, dtype=jnp.float32)
    freqs = 1.0 / (theta ** (jnp.arange(D, dtype=jnp.float32) / D))
    t = pos[:, None] * freqs[None, :]                     # [S, D]
    return jnp.cos(t), jnp.sin(t)


def qwen2_forward(params, input_ids, cfg):
    B, S = input_ids.shape
    H, NH, NKV = cfg["hidden"], cfg["num_heads"], cfg["num_kv"]
    D = H // NH
    groups = NH // NKV
    scale = D ** (-0.5)
    M = B * S
    nq, nk = NH * D, NKV * D

    hs2d = jnp.take(params["embed"], input_ids, axis=0).astype(jnp.float32).reshape(M, H)
    cos, sin = rope_tables(S, D, cfg["rope_theta"])

    for layer in params["layers"]:
        # --- attention: fused ln1 + QKV projection (bf16 out) ---
        qkv = ln_matmul(hs2d, layer["ln1"], layer["wqkv"], layer["bqkv"],
                        eps=cfg["eps"], out_dtype=jnp.bfloat16)
        # TODO(synk): write QKV head-major directly via the out_spec to drop these
        #             XLA transposes (extra HBM pass per layer).
        q = qkv[:, :nq].reshape(B, S, NH, D).transpose(0, 2, 1, 3)
        k = qkv[:, nq:nq + nk].reshape(B, S, NKV, D).transpose(0, 2, 1, 3)
        v = qkv[:, nq + nk:].reshape(B, S, NKV, D).transpose(0, 2, 1, 3)
        attn = flash_attention(q, k, v, cos, sin, scale=scale, groups=groups)
        attn2d = attn.transpose(0, 2, 1, 3).reshape(M, H)
        hs2d = oproj_residual(attn2d, layer["wo"], hs2d)

        # --- MLP: fused ln2 + SwiGLU + residual ---
        hs2d = mlp_block(hs2d, layer["ln2"], layer["wg"], layer["wu"], layer["wd"],
                         eps=cfg["eps"])

    # final norm fused into the lm_head matmul (bias-free)
    logits = ln_matmul(hs2d, params["norm"], params["lm_head"], None,
                       eps=cfg["eps"], out_dtype=jnp.float32, tn_target=512)
    return logits.reshape(B, S, cfg["vocab"])


# ------------------------- pure-JAX reference check -------------------------- #

def _ref_rmsnorm(x, w, eps):
    var = jnp.mean(x * x, axis=-1, keepdims=True)
    return w * (x * jax.lax.rsqrt(var + eps))


def ref_forward(params, input_ids, cfg):
    B, S = input_ids.shape
    H, NH, NKV = cfg["hidden"], cfg["num_heads"], cfg["num_kv"]
    D = H // NH
    groups = NH // NKV
    scale = D ** (-0.5)
    nq, nk = NH * D, NKV * D

    pos = jnp.arange(S, dtype=jnp.float32)
    freqs = 1.0 / (cfg["rope_theta"] ** (jnp.arange(D, dtype=jnp.float32) / D))
    t = pos[:, None] * freqs[None, :]
    cos4, sin4 = jnp.cos(t)[None, None], jnp.sin(t)[None, None]

    hs = jnp.take(params["embed"], input_ids, axis=0).astype(jnp.float32)

    def rot_half(x):
        x1, x2 = jnp.split(x, 2, axis=-1)
        return jnp.concatenate([-x2, x1], axis=-1)

    row = jnp.arange(S)[:, None]
    col = jnp.arange(S)[None, :]
    causal = jnp.where(col <= row, 0.0, -jnp.inf)

    for layer in params["layers"]:
        x = _ref_rmsnorm(hs, layer["ln1"], cfg["eps"]).reshape(B * S, H)
        qkv = x @ layer["wqkv"].astype(jnp.float32) + layer["bqkv"]
        q = qkv[:, :nq].reshape(B, S, NH, D).transpose(0, 2, 1, 3)
        k = qkv[:, nq:nq + nk].reshape(B, S, NKV, D).transpose(0, 2, 1, 3)
        v = qkv[:, nq + nk:].reshape(B, S, NKV, D).transpose(0, 2, 1, 3)
        q = q * cos4 + rot_half(q) * sin4
        k = k * cos4 + rot_half(k) * sin4
        k = jnp.repeat(k, groups, axis=1)
        v = jnp.repeat(v, groups, axis=1)
        s = jnp.einsum("bhqd,bhkd->bhqk", q, k) * scale + causal
        p = jax.nn.softmax(s, axis=-1)
        o = jnp.einsum("bhqk,bhkd->bhqd", p, v)
        o = o.transpose(0, 2, 1, 3).reshape(B * S, H) @ layer["wo"].astype(jnp.float32)
        hs = hs + o.reshape(B, S, H)

        x = _ref_rmsnorm(hs, layer["ln2"], cfg["eps"])
        g = x @ layer["wg"].astype(jnp.float32)
        u = x @ layer["wu"].astype(jnp.float32)
        hs = hs + ((g * jax.nn.sigmoid(g)) * u) @ layer["wd"].astype(jnp.float32)

    hs = _ref_rmsnorm(hs, params["norm"], cfg["eps"])
    return hs.reshape(B * S, H) @ params["lm_head"].astype(jnp.float32)


# --------------------------------- params ------------------------------------ #

def init_params(key, cfg):
    H, I, V = cfg["hidden"], cfg["inter"], cfg["vocab"]
    NH, NKV = cfg["num_heads"], cfg["num_kv"]
    D = H // NH
    nqkv = (NH + 2 * NKV) * D
    keys = iter(jax.random.split(key, 8 * cfg["layers"] + 8))

    def w(shape, scl=0.02, dtype=jnp.bfloat16):
        return (scl * jax.random.normal(next(keys), shape, jnp.float32)).astype(dtype)

    params = {
        "embed": w((V, H), dtype=jnp.float32),
        "norm": jnp.ones((1, H), jnp.float32),
        "lm_head": w((H, V)),
        "layers": [],
    }
    for _ in range(cfg["layers"]):
        params["layers"].append(dict(
            wqkv=w((H, nqkv)), bqkv=w((1, nqkv), dtype=jnp.float32),
            wo=w((NH * D, H)),
            wg=w((H, I)), wu=w((H, I)), wd=w((I, H)),
            ln1=jnp.ones((1, H), jnp.float32),
            ln2=jnp.ones((1, H), jnp.float32),
        ))
    return params


if __name__ == "__main__":
    cfg = dict(hidden=32, num_heads=4, num_kv=2, layers=2, inter=64,
               vocab=256, eps=1e-6, rope_theta=1e6)
    key = jax.random.PRNGKey(0)
    pkey, dkey = jax.random.split(key)
    params = init_params(pkey, cfg)

    B, S = 2, 8
    input_ids = jax.random.randint(dkey, (B, S), 0, cfg["vocab"])

    logits = qwen2_forward(params, input_ids, cfg)
    logits = jax.block_until_ready(logits)
    assert logits.shape == (B, S, cfg["vocab"])
    assert bool(jnp.all(jnp.isfinite(logits)))

    with jax.default_matmul_precision("highest"):
        ref = ref_forward(params, input_ids, cfg).reshape(B, S, cfg["vocab"])
    max_err = float(jnp.max(jnp.abs(logits - ref)))
    # bf16 matmul operands vs. f32 reference -> loose tolerance
    assert jnp.allclose(logits, ref, rtol=5e-2, atol=2e-2), f"max_err={max_err}"

    print("KERNEL_OK")
</pallas_src>

<mosaic_0001>
module attributes {stable_mosaic.version = 11 : i64} {
  func.func @_ln_matmul_bias_kernel(%arg0: i32, %arg1: i32, %arg2: memref<16x32xf32, #tpu.memory_space<vmem>>, %arg3: memref<1x32xf32, #tpu.memory_space<vmem>>, %arg4: memref<32x64xbf16, #tpu.memory_space<vmem>>, %arg5: memref<1x64xf32, #tpu.memory_space<vmem>>, %arg6: memref<16x64xbf16, #tpu.memory_space<vmem>>) attributes {dimension_semantics = [#tpu.dimension_semantics<parallel>, #tpu.dimension_semantics<parallel>], iteration_bounds = array<i64: 1, 1>, scalar_prefetch = 0 : i64, scratch_operands = 0 : i64, tpu.core_type = #tpu.core_type<tc>, window_params = [{transform_indices = @transform_0, window_bounds = array<i64: 16, 32>}, {pipeline_mode = #tpu.pipeline_mode<synchronous>, transform_indices = @transform_1, window_bounds = array<i64: 1, 32>}, {transform_indices = @transform_2, window_bounds = array<i64: 32, 64>}, {transform_indices = @transform_3, window_bounds = array<i64: 1, 64>}, {transform_indices = @transform_4, window_bounds = array<i64: 16, 64>}]} {
    %c0 = arith.constant 0 : index
    %c0_0 = arith.constant 0 : index
    %0 = vector.load %arg2[%c0, %c0_0] : memref<16x32xf32, #tpu.memory_space<vmem>>, vector<16x32xf32>
    %1 = arith.mulf %0, %0 : vector<16x32xf32>
    %cst = arith.constant dense<0.000000e+00> : vector<16xf32>
    %2 = vector.multi_reduction <add>, %1, %cst [1] : vector<16x32xf32> to vector<16xf32>
    %3 = vector.shape_cast %2 : vector<16xf32> to vector<16x1xf32>
    %cst_1 = arith.constant 3.200000e+01 : f32
    %4 = vector.broadcast %cst_1 : f32 to vector<16x1xf32>
    %5 = arith.divf %3, %4 : vector<16x1xf32>
    %c0_2 = arith.constant 0 : index
    %c0_3 = arith.constant 0 : index
    %6 = vector.load %arg3[%c0_2, %c0_3] : memref<1x32xf32, #tpu.memory_space<vmem>>, vector<1x32xf32>
    %cst_4 = arith.constant 9.99999997E-7 : f32
    %7 = vector.broadcast %cst_4 : f32 to vector<16x1xf32>
    %8 = arith.addf %5, %7 : vector<16x1xf32>
    %9 = math.rsqrt %8 : vector<16x1xf32>
    %10 = vector.broadcast %9 : vector<16x1xf32> to vector<16x32xf32>
    %11 = arith.mulf %0, %10 : vector<16x32xf32>
    %12 = vector.broadcast %6 : vector<1x32xf32> to vector<16x32xf32>
    %13 = arith.mulf %12, %11 : vector<16x32xf32>
    %14 = arith.truncf %13 : vector<16x32xf32> to vector<16x32xbf16>
    %c0_5 = arith.constant 0 : index
    %c0_6 = arith.constant 0 : index
    %15 = vector.load %arg4[%c0_5, %c0_6] : memref<32x64xbf16, #tpu.memory_space<vmem>>, vector<32x64xbf16>
    %cst_7 = arith.constant dense<0.000000e+00> : vector<16x64xf32>
    %16 = tpu.matmul %14, %15, %cst_7 {dimension_numbers = #tpu.dot_dimension_numbers<[1], [0], [0], [1], [0, 0, 1, 1], [], []>} : vector<16x32xbf16>, vector<32x64xbf16>, vector<16x64xf32> -> vector<16x64xf32>
    %c0_8 = arith.constant 0 : index
    %c0_9 = arith.constant 0 : index
    %17 = vector.load %arg5[%c0_8, %c0_9] : memref<1x64xf32, #tpu.memory_space<vmem>>, vector<1x64xf32>
    %18 = vector.broadcast %17 : vector<1x64xf32> to vector<16x64xf32>
    %19 = arith.addf %16, %18 : vector<16x64xf32>
    %20 = arith.truncf %19 : vector<16x64xf32> to vector<16x64xbf16>
    %c0_10 = arith.constant 0 : index
    %c0_11 = arith.constant 0 : index
    %21 = vector.load %arg6[%c0_10, %c0_11] : memref<16x64xbf16, #tpu.memory_space<vmem>>, vector<16x64xbf16>
    tpu.vector_store %arg6[%c0_10, %c0_11], %20 {strides = array<i32>} : memref<16x64xbf16, #tpu.memory_space<vmem>>, vector<16x64xbf16>,
    return
  }
  func.func @transform_0(%arg0: i32, %arg1: i32) -> (i32, i32) {
    %c0_i32 = arith.constant 0 : i32
    %c0_i32_0 = arith.constant 0 : i32
    return %arg0, %c0_i32 : i32, i32
  }
  func.func @transform_1(%arg0: i32, %arg1: i32) -> (i32, i32) {
    %c0_i32 = arith.constant 0 : i32
    %c0_i32_0 = arith.constant 0 : i32
    %c0_i32_1 = arith.constant 0 : i32
    return %c0_i32, %c0_i32_0 : i32, i32
  }
  func.func @transform_2(%arg0: i32, %arg1: i32) -> (i32, i32) {
    %c0_i32 = arith.constant 0 : i32
    %c0_i32_0 = arith.constant 0 : i32
    return %c0_i32, %arg1 : i32, i32
  }
  func.func @transform_3(%arg0: i32, %arg1: i32) -> (i32, i32) {
    %c0_i32 = arith.constant 0 : i32
    %c0_i32_0 = arith.constant 0 : i32
    return %c0_i32, %arg1 : i32, i32
  }
  func.func @transform_4(%arg0: i32, %arg1: i32) -> (i32, i32) {
    %c0_i32 = arith.constant 0 : i32
    return %arg0, %arg1 : i32, i32
  }
}

</mosaic_0001>

<llo_original>
// kernel: tpu_custom_call.1
$region0: #{tpu_custom_call.1}
  #allocation0 [shape = 'u32[]', space=smem, size = 0x4, offset = 0x4, fixed_abs, tag = 'smem constant byte address 0x4 - core index']
  #allocation1 [shape = 'u32[144,128]{1,0:T(1,128)}', space=vmem, size = 0x12000, scoped, tag = 'internal scratch']
  %s0 = inlined_call_operand.hbm [shape: f32[16,32], index: 0, kind: input, shape index: {}]
  %s1 = inlined_call_operand.vmem [shape: f32[1,32], index: 1, kind: input, shape index: {}]
  %s2 = inlined_call_operand.hbm [shape: bf16[32,64], index: 2, kind: input, shape index: {}]
  %s3 = inlined_call_operand.vmem [shape: f32[1,64], index: 3, kind: input, shape index: {}]
  %s4 = inlined_call_operand.hbm [shape: bf16[16,64], index: 4, kind: output, shape index: {}]
  %s5 = sld [smem:[#allocation0]]
  $region34: #{tpu_custom_call.1} parent=0
    _
  %s7 = ssub.s32 1, %s5
  %s8 = scalar_select 0, %s7, %s5
  $region1: #{tpu_custom_call.1} parent=0
    #allocation2 [shape = 'u8[8192]{0}', space=vmem, size = 0x2000, scoped, tag = 'input window, operand 0, single buffered']
    #allocation3 [shape = 's32[1]{0}', space=sflag, size = 0x4, scoped, tag = 'scoped memory for tpu_custom_call.1']
    #allocation4 [shape = 's32[1]{0}', space=sflag, size = 0x4, scoped, tag = 'scoped memory for tpu_custom_call.1']
    #allocation5 [shape = 'u8[8192]{0}', space=vmem, size = 0x2000, scoped, tag = 'input window, operand 2, single buffered']
    #allocation6 [shape = 's32[1]{0}', space=sflag, size = 0x4, scoped, tag = 'scoped memory for tpu_custom_call.1']
    #allocation7 [shape = 'u8[4096]{0}', space=vmem, size = 0x1000, scoped, tag = 'output window, operand 0, single buffered']
    %9 = vsyncpa [#allocation3], 0
    %10 = vsyncpa [#allocation6], 0
    %11 = vsyncpa [#allocation4], 0
    // Predicated region
    $region2: #{tpu_custom_call.1} parent=1 // pred_check
      _
    $region3: #{tpu_custom_call.1} parent=1 // pred_check_branch
      %13 = sbr.rel (0) target = $region5
    $region4: #{tpu_custom_call.1} parent=1 // pred_region
      %s15 = ssub.s32 256, 256
      %16 = vsyncadd [#allocation3], %s15
      %s17 = sshll.u32 [#allocation2], 4
      %s18 = int_to_ptr.vmem [resolvable:$true] %s17
      %23 = dma.hbm_to_vmem [thread:$0]  %s0, 256, %s18, [#allocation3], 128, 128, 8
    $region5: #{tpu_custom_call.1} parent=1 // pred_fallthru
      _
    // Predicated region
    $region6: #{tpu_custom_call.1} parent=1 // pred_check
      _
    $region7: #{tpu_custom_call.1} parent=1 // pred_check_branch
      %25 = sbr.rel (0) target = $region9
    $region8: #{tpu_custom_call.1} parent=1 // pred_region
      _
    $region9: #{tpu_custom_call.1} parent=1 // pred_fallthru
      _
    // Predicated region
    $region10: #{tpu_custom_call.1} parent=1 // pred_check
      _
    $region11: #{tpu_custom_call.1} parent=1 // pred_check_branch
      %27 = sbr.rel (0) target = $region13
    $region12: #{tpu_custom_call.1} parent=1 // pred_region
      %s29 = ssub.s32 256, 256
      %30 = vsyncadd [#allocation6], %s29
      %s31 = sshll.u32 [#allocation5], 4
      %s32 = int_to_ptr.vmem [resolvable:$true] %s31
      %37 = dma.hbm_to_vmem [thread:$0]  %s2, 256, %s32, [#allocation6], 64, 64, 4
    $region13: #{tpu_custom_call.1} parent=1 // pred_fallthru
      _
    // Predicated region
    $region14: #{tpu_custom_call.1} parent=1 // pred_check
      _
    $region15: #{tpu_custom_call.1} parent=1 // pred_check_branch
      %39 = sbr.rel (0) target = $region17
    $region16: #{tpu_custom_call.1} parent=1 // pred_region
      _
    $region17: #{tpu_custom_call.1} parent=1 // pred_fallthru
      _
    // Predicated region
    $region18: #{tpu_custom_call.1} parent=1 // pred_check
      _
    $region19: #{tpu_custom_call.1} parent=1 // pred_check_branch
      %41 = sbr.rel (0) target = $region21
    $region20: #{tpu_custom_call.1} parent=1 // pred_region
      %42 = dma.done [#allocation3], 256
    $region21: #{tpu_custom_call.1} parent=1 // pred_fallthru
      _
    // Predicated region
    $region22: #{tpu_custom_call.1} parent=1 // pred_check
      _
    $region23: #{tpu_custom_call.1} parent=1 // pred_check_branch
      %44 = sbr.rel (0) target = $region25
    $region24: #{tpu_custom_call.1} parent=1 // pred_region
      %45 = dma.done [#allocation6], 256
    $region25: #{tpu_custom_call.1} parent=1 // pred_fallthru
      _
    %v47 = vld [vmem:[#allocation2] sm:$0xff]
    %v48 = vld [vmem:[#allocation2 + $0x8] sm:$0xff]
    %v49 = vmul.f32 %v47, %v47
    %v50 = vmul.f32 %v48, %v48
    %vm51 = vcmask 261120
    %v52 = vsel %vm51, %v49, 0.0
    %53 = vadd.xlane.f32.xlu0 %v52
    %v54 = vpop.xlane.xlu0 %53
    %v55 = vsel %vm51, %v50, 0.0
    %56 = vadd.xlane.f32.xlu0 %v55
    %v57 = vpop.xlane.xlu0 %56
    %v58 = vrcp.pop 32.0
    %v59 = vmul.f32 %v54, %v58
    %v60 = vmul.f32 %v57, %v58
    %v61 = vld [vmem:[%s1] sm:$0x1]
    %v62 = vadd.f32 %v59, 1e-06
    %v63 = vadd.f32 %v60, 1e-06
    %v64 = vrsqrt.pop %v62
    %v65 = vrsqrt.pop %v63
    %v66 = vmul.f32 %v47, %v64
    %v67 = vmul.f32 %v48, %v65
    %v69 = vlaneseq
    %v70 = vshrl.u32 %v69, 7
    %v71 = vsub.s32 0, %v70
    %v72 = vrot.slane %v61, %v71
    %v74 = vmul.f32 %v72, %v66
    %v75 = vmul.f32 %v72, %v67
    %v76 = vpack.c.bf16 %v75, %v74
    %v77 = vld [vmem:[#allocation5] sm:$0xf]
    %v78 = vld [vmem:[#allocation5 + $0x4] sm:$0xf]
    %v79 = vld [vmem:[#allocation5 + $0x8] sm:$0xf]
    %v80 = vld [vmem:[#allocation5 + $0xc] sm:$0xf]
    %v81 = vld [vmem:[%s3] sm:$0x1]
    %v83 = vlaneseq
    %v84 = vshrl.u32 %v83, 7
    %v85 = vsub.s32 0, %v84
    %v86 = vrot.slane %v81, %v85
    %v92 = vunpack.c.l.b16 %v77
    %v93 = vunpack.c.l.b16 %v78
    %v94 = vunpack.c.l.b16 %v79
    %v95 = vunpack.c.l.b16 %v80
    %v96 = vpack.c.b16 %v93, %v92
    %v97 = vpack.c.b16 %v95, %v94
    %v101 = vsel %vm51, %v76, 0
    %103 = vmatprep.subr.bf16.mxu0 0
    %104 = vmatpush1.bf16.msra.mxu0 0
    %105 = vmatprep.subr.bf16.mxu0 0
    %106 = vmatpush1.bf16.msra.mxu0 0
    %107 = vmatprep.subr.bf16.mxu0 0
    %108 = vmatpush1.bf16.msra.mxu0 0
    %109 = vmatprep.subr.bf16.mxu0 0
    %110 = vmatpush1.bf16.msra.mxu0 0
    %111 = vmatprep.subr.bf16.mxu0 0
    %112 = vmatpush1.bf16.msra.mxu0 0
    %113 = vmatprep.subr.bf16.mxu0 0
    %114 = vmatpush1.bf16.msra.mxu0 0
    %115 = vmatprep.subr.bf16.mxu0 0
    %116 = vmatpush1.bf16.msra.mxu0 %v97
    %117 = vmatprep.subr.bf16.mxu0 0
    %118 = vmatpush1.bf16.msra.mxu0 %v96
    %119 = vmatprep.subr.bf16.mxu0 0
    %120 = vmatpush2.bf16.msra.mxu0 0
    %121 = vmatprep.subr.bf16.mxu0 0
    %122 = vmatpush2.bf16.msra.mxu0 0
    %123 = vmatprep.subr.bf16.mxu0 0
    %124 = vmatpush2.bf16.msra.mxu0 0
    %125 = vmatprep.subr.bf16.mxu0 0
    %126 = vmatpush2.bf16.msra.mxu0 0
    %127 = vmatprep.subr.bf16.mxu0 0
    %128 = vmatpush2.bf16.msra.mxu0 0
    %129 = vmatprep.subr.bf16.mxu0 0
    %130 = vmatpush2.bf16.msra.mxu0 0
    %131 = vmatprep.subr.bf16.mxu0 0
    %132 = vmatpush2.bf16.msra.mxu0 0
    %133 = vmatprep.subr.bf16.mxu0 0
    %134 = vmatpush2.bf16.msra.mxu0 0
    %135 = vmatprep.mubr.bf16.mxu0 0
    %136 = vmatmul.mubr.bf16.gmra.mxu0 %v101
    %v137 = vpop.f32.mrf.mxu0
    %v138 = vadd.f32 %v86, %v137
    %v139 = vpop.f32.mrf.mxu0
    %v140 = vpop.f32.mrf.mxu0
    %v141 = vadd.f32 %v86, %v140
    %v142 = vpop.f32.mrf.mxu0
    %143 = vdwg.mxu0
    %v144 = vpack.c.bf16 %v141, %v138
    %v146 = vunpack.c.l.b16 %v144
    %v147 = vunpack.c.h.b16 %v144
    %v148 = vpack.c.b16 %v146, %v146
    %v149 = vpack.c.b16 %v147, %v147
    %vm152 = vcmask 519168
    %153 = vst.msk [vmem:[#allocation7] sm:$0xf] %vm152, %v148
    %154 = vst.msk [vmem:[#allocation7 + $0x4] sm:$0xf] %vm152, %v149
    // Predicated region
    $region26: #{tpu_custom_call.1} parent=1 // pred_check
      _
    $region27: #{tpu_custom_call.1} parent=1 // pred_check_branch
      %156 = sbr.rel (0) target = $region29
    $region28: #{tpu_custom_call.1} parent=1 // pred_region
      %s158 = ssub.s32 128, 128
      %159 = vsyncadd [#allocation4], %s158
      %s160 = sshll.u32 [#allocation7], 4
      %s161 = int_to_ptr.vmem [resolvable:$true] %s160
      %166 = dma.vmem_to_hbm [thread:$0]  %s161, 128, %s4, [#allocation4], 64, 64, 4
    $region29: #{tpu_custom_call.1} parent=1 // pred_fallthru
      _
    // Predicated region
    $region30: #{tpu_custom_call.1} parent=1 // pred_check
      _
    $region31: #{tpu_custom_call.1} parent=1 // pred_check_branch
      %168 = sbr.rel (0) target = $region33
    $region32: #{tpu_custom_call.1} parent=1 // pred_region
      %169 = dma.done [#allocation4], 128
    $region33: #{tpu_custom_call.1} parent=1 // pred_fallthru
      _
    %170 = vsyncpa [#allocation3], 1
    %171 = vsyncpa [#allocation6], 1
    %172 = vsyncpa [#allocation4], 1

</llo_original>
